<compile_context>
chip_gen: v7x
topology: tpu7x:2x2x1
jax: 0.10.0
libtpu: 0.0.40
codegen_flags: <defaults>
</compile_context>

<pallas_src>
import functools

import jax
import jax.numpy as jnp
from jax import lax
from jax.experimental import pallas as pl
from jax.experimental.pallas import tpu as pltpu

_LANE = 128
_SUBLANE = 8
_TARGET_BLOCK_BYTES = 2 * 1024 * 1024   # per logits block (f32-equivalent budget)
_VMEM_LIMIT_BYTES = 32 * 1024 * 1024    # safe across v5e / v6e / v7x


def _round_up(x, m):
    return -(-x // m) * m


def _pick_cols(n_cols, c, *, force_two_tiles=False, override=None):
    """Pick the lane-axis tile width (multiple of 128, or the full dim when tiny)."""
    if n_cols <= _LANE:
        return n_cols                               # full-dim block (== array dim)
    n_lane = _round_up(n_cols, _LANE)
    if override is not None:
        cols = max(_LANE, (int(override) // _LANE) * _LANE)
        return min(cols, n_lane)
    c_pad = max(_SUBLANE, _round_up(c, _SUBLANE))   # sublane padding of the C axis
    cols = max(_LANE, (_TARGET_BLOCK_BYTES // (4 * c_pad)) // _LANE * _LANE)
    cols = min(cols, n_lane)
    if force_two_tiles and n_lane >= 2 * _LANE and cols > n_lane // 2:
        cols = _round_up(n_lane // 2, _LANE)        # >= 2 tiles -> both v7x TCs busy
    return cols


def _focal_loss_kernel(pred_ref, labels_ref, *rest, gamma, n_valid, tile_cols,
                       col_grid_axis, has_alpha):
    # pred_ref:   (C, TN) logits, native dtype -- classes on sublanes, samples on lanes
    # labels_ref: (1, TN) int32 target classes
    # alpha_ref:  (C, 1)  f32 per-class weights (only when has_alpha)
    # out_ref:    (..., 1, 128) f32 lane-dense per-tile partial-loss block
    if has_alpha:
        alpha_ref, out_ref = rest
    else:
        (out_ref,) = rest

    x = pred_ref[...].astype(jnp.float32)            # cast after the (narrow) DMA
    labels = labels_ref[...]
    c, tn = x.shape

    # log-softmax over the class (sublane) axis.
    m = jnp.max(x, axis=0, keepdims=True)                   # (1, TN)
    z = x - m
    sum_exp = jnp.sum(jnp.exp(z), axis=0, keepdims=True)    # (1, TN)
    log_z = jnp.log(sum_exp)

    # one-hot gather of the target class via a sublane iota compare.
    class_ids = lax.broadcasted_iota(jnp.int32, (c, tn), dimension=0)
    one_hot = (class_ids == labels).astype(jnp.float32)     # (C, TN)
    z_t = jnp.sum(one_hot * z, axis=0, keepdims=True)       # (1, TN)
    logpt_t = z_t - log_z                                    # <= 0
    pt = jnp.exp(logpt_t)                                    # pt before alpha (as in torch)

    if has_alpha:
        at = jnp.sum(one_hot * alpha_ref[...], axis=0, keepdims=True)
        logpt_w = logpt_t * at
    else:
        logpt_w = logpt_t

    one_m_pt = jnp.maximum(1.0 - pt, 0.0)                   # clamp float error (pt <= 1)
    if gamma == 0.0:
        focal = jnp.ones_like(one_m_pt)
    elif gamma == 0.5:
        focal = jnp.sqrt(one_m_pt)                            # single EUP op
    elif gamma == 1.0:
        focal = one_m_pt
    elif gamma == 2.0:
        focal = one_m_pt * one_m_pt
    else:
        focal = one_m_pt ** gamma                             # generic fallback
    loss = -focal * logpt_w                                    # (1, TN)

    # Mask the ragged tail of the last tile. The input is NOT padded, so those
    # columns hold undefined data; jnp.where discards them (never multiplies).
    col = (pl.program_id(col_grid_axis) * tile_cols
           + lax.broadcasted_iota(jnp.int32, (1, tn), dimension=1))
    loss = jnp.where(col < n_valid, loss, 0.0)

    out_ref[...] = jnp.full(out_ref.shape, jnp.sum(loss), dtype=jnp.float32)


def _alpha_vector(alpha, c):
    if alpha is None:
        return None
    if isinstance(alpha, (float, int)):
        vec = jnp.array([float(alpha), 1.0 - float(alpha)], jnp.float32)
    else:
        vec = jnp.asarray(alpha, dtype=jnp.float32)
    return vec.reshape(c, 1)   # mirrors the module: scalar alpha implies C == 2


def _run_2d(x, t, alpha2d, gamma, tile_cols):
    # x: (N, C) logits (native dtype), t: (N,) int32 labels.
    n, c = x.shape
    pred_t = jnp.transpose(x, (1, 0))                 # (C, N): lane-dense batch
    labels2d = t.reshape(1, n)

    tn = _pick_cols(n, c, force_two_tiles=True, override=tile_cols)
    num_tiles = -(-n // tn)
    has_alpha = alpha2d is not None

    kernel = functools.partial(
        _focal_loss_kernel, gamma=float(gamma), n_valid=n, tile_cols=tn,
        col_grid_axis=0, has_alpha=has_alpha)

    in_specs = [
        pl.BlockSpec((c, tn), lambda i: (0, i)),      # logits tile
        pl.BlockSpec((1, tn), lambda i: (0, i)),      # labels tile
    ]
    args = [pred_t, labels2d]
    if has_alpha:
        in_specs.append(pl.BlockSpec((c, 1), lambda i: (0, 0)))
        args.append(alpha2d)

    partials = pl.pallas_call(
        kernel,
        out_shape=jax.ShapeDtypeStruct((num_tiles, 1, _LANE), jnp.float32),
        grid_spec=pl.GridSpec(
            grid=(num_tiles,),
            in_specs=in_specs,
            out_specs=pl.BlockSpec((1, 1, _LANE), lambda i: (i, 0, 0)),
        ),
        compiler_params=pltpu.CompilerParams(
            dimension_semantics=("parallel",),
            vmem_limit_bytes=_VMEM_LIMIT_BYTES),
    )(*args)
    return jnp.sum(partials[:, 0, 0]), n


def _run_nd(inp, target, alpha2d, gamma, tile_cols):
    # inp: (N, C, *spatial) logits kept in the native layout (no transpose).
    n0, c = inp.shape[0], inp.shape[1]
    x3 = inp.reshape(n0, c, -1)                       # (N0, C, S): cheap reshape
    s = x3.shape[2]
    labels3 = target.reshape(n0, 1, s).astype(jnp.int32)

    ts = _pick_cols(s, c, force_two_tiles=False, override=tile_cols)
    s_tiles = -(-s // ts)
    has_alpha = alpha2d is not None

    kernel = functools.partial(
        _focal_loss_kernel, gamma=float(gamma), n_valid=s, tile_cols=ts,
        col_grid_axis=1, has_alpha=has_alpha)

    in_specs = [
        pl.BlockSpec((None, c, ts), lambda b, j: (b, 0, j)),   # logits tile (C, TS)
        pl.BlockSpec((None, 1, ts), lambda b, j: (b, 0, j)),   # labels tile (1, TS)
    ]
    args = [x3, labels3]
    if has_alpha:
        in_specs.append(pl.BlockSpec((c, 1), lambda b, j: (0, 0)))
        args.append(alpha2d)

    partials = pl.pallas_call(
        kernel,
        out_shape=jax.ShapeDtypeStruct((n0, s_tiles, 1, _LANE), jnp.float32),
        grid_spec=pl.GridSpec(
            grid=(n0, s_tiles),
            in_specs=in_specs,
            out_specs=pl.BlockSpec((1, 1, 1, _LANE), lambda b, j: (b, j, 0, 0)),
        ),
        compiler_params=pltpu.CompilerParams(
            dimension_semantics=("parallel", "parallel"),
            vmem_limit_bytes=_VMEM_LIMIT_BYTES),
    )(*args)
    return jnp.sum(partials[:, :, 0, 0]), n0 * s


def focal_loss(inp, target, *, gamma=0.5, alpha=None, size_average=True,
               tile_cols=None):
    """Forward pass of FocalLoss.

    inp:    [N, C] logits or [N, C, *spatial] logits.
    target: [N] or [N, *spatial] integer class ids.
    """
    inp = jnp.asarray(inp)
    target = jnp.asarray(target)
    c = inp.shape[1]
    alpha2d = _alpha_vector(alpha, c)

    if inp.ndim > 2:
        total, count = _run_nd(inp, target, alpha2d, gamma, tile_cols)
    else:
        total, count = _run_2d(inp, target.reshape(-1).astype(jnp.int32),
                               alpha2d, gamma, tile_cols)
    if size_average:
        return total / count
    return total


def _reference(inp, target, *, gamma=0.5, alpha=None, size_average=True):
    # Pure-JAX mirror of the PyTorch module's forward (sanity check only).
    inp = jnp.asarray(inp, dtype=jnp.float32)
    if inp.ndim > 2:
        n0, c = inp.shape[0], inp.shape[1]
        x = inp.reshape(n0, c, -1)
        x = jnp.transpose(x, (0, 2, 1)).reshape(-1, c)
    else:
        x = inp
    t = jnp.asarray(target).reshape(-1)
    logpt = jax.nn.log_softmax(x, axis=1)
    logpt_t = jnp.take_along_axis(logpt, t[:, None], axis=1)[:, 0]
    pt = jnp.exp(logpt_t)
    if alpha is not None:
        if isinstance(alpha, (float, int)):
            alpha_vec = jnp.array([float(alpha), 1.0 - float(alpha)], jnp.float32)
        else:
            alpha_vec = jnp.asarray(alpha, dtype=jnp.float32)
        logpt_t = logpt_t * alpha_vec[t]
    loss = -((1.0 - pt) ** gamma) * logpt_t
    return jnp.mean(loss) if size_average else jnp.sum(loss)


if __name__ == "__main__":
    key = jax.random.PRNGKey(0)
    k1, k2, k3, k4 = jax.random.split(key, 4)

    # 1) Segmentation-style input: ndim>2 path with NO wrapper transpose.
    b, c, h, w = 2, 4, 8, 8
    logits = jax.random.normal(k1, (b, c, h, w), dtype=jnp.float32)
    target = jax.random.randint(k2, (b, h, w), 0, c, dtype=jnp.int32)
    loss = jax.block_until_ready(focal_loss(logits, target, gamma=0.5))
    ref = _reference(logits, target, gamma=0.5)
    assert jnp.allclose(loss, ref, rtol=1e-5, atol=1e-5), (loss, ref)

    # 2) 2-D path with ragged N: multi-tile + in-kernel tail masking (no padding).
    n2, c2 = 300, 10
    logits2 = jax.random.normal(k3, (n2, c2), dtype=jnp.float32)
    target2 = jax.random.randint(k4, (n2,), 0, c2, dtype=jnp.int32)
    loss2 = jax.block_until_ready(
        focal_loss(logits2, target2, gamma=0.5, tile_cols=128))
    ref2 = _reference(logits2, target2, gamma=0.5)
    assert jnp.allclose(loss2, ref2, rtol=1e-5, atol=1e-5), (loss2, ref2)

    # 3) alpha path (per-class weights) + size_average=False on the seg input.
    alpha_list = [0.1, 0.2, 0.3, 0.4]
    loss3 = jax.block_until_ready(
        focal_loss(logits, target, gamma=2.0, alpha=alpha_list, size_average=False))
    ref3 = _reference(logits, target, gamma=2.0, alpha=alpha_list, size_average=False)
    assert jnp.allclose(loss3, ref3, rtol=1e-5, atol=1e-5), (loss3, ref3)

    print("KERNEL_OK")
</pallas_src>

<mosaic_0001>
module attributes {stable_mosaic.version = 11 : i64} {
  func.func @_focal_loss_kernel(%arg0: i32, %arg1: i32, %arg2: memref<1x4x64xf32, #tpu.memory_space<vmem>>, %arg3: memref<1x1x64xi32, #tpu.memory_space<vmem>>, %arg4: memref<1x1x1x128xf32, #tpu.memory_space<vmem>>) attributes {dimension_semantics = [#tpu.dimension_semantics<parallel>, #tpu.dimension_semantics<parallel>], iteration_bounds = array<i64: 2, 1>, scalar_prefetch = 0 : i64, scratch_operands = 0 : i64, tpu.core_type = #tpu.core_type<tc>, window_params = [{transform_indices = @transform_0, window_bounds = array<i64: 1, 4, 64>}, {transform_indices = @transform_1, window_bounds = array<i64: 1, 1, 64>}, {transform_indices = @transform_2, window_bounds = array<i64: 1, 1, 1, 128>}]} {
    %c0 = arith.constant 0 : index
    %c0_0 = arith.constant 0 : index
    %c0_1 = arith.constant 0 : index
    %0 = vector.load %arg2[%c0, %c0_0, %c0_1] : memref<1x4x64xf32, #tpu.memory_space<vmem>>, vector<1x4x64xf32>
    %1 = vector.shape_cast %0 : vector<1x4x64xf32> to vector<4x64xf32>
    %c0_2 = arith.constant 0 : index
    %c0_3 = arith.constant 0 : index
    %c0_4 = arith.constant 0 : index
    %2 = vector.load %arg3[%c0_2, %c0_3, %c0_4] : memref<1x1x64xi32, #tpu.memory_space<vmem>>, vector<1x1x64xi32>
    %3 = vector.shape_cast %2 : vector<1x1x64xi32> to vector<1x64xi32>
    %cst = arith.constant dense<0xFF800000> : vector<64xf32>
    %4 = vector.multi_reduction <maximumf>, %1, %cst [0] : vector<4x64xf32> to vector<64xf32>
    %5 = vector.shape_cast %4 : vector<64xf32> to vector<1x64xf32>
    %6 = vector.broadcast %5 : vector<1x64xf32> to vector<4x64xf32>
    %7 = arith.subf %1, %6 : vector<4x64xf32>
    %8 = math.exp %7 : vector<4x64xf32>
    %cst_5 = arith.constant dense<0.000000e+00> : vector<64xf32>
    %9 = vector.multi_reduction <add>, %8, %cst_5 [0] : vector<4x64xf32> to vector<64xf32>
    %10 = vector.shape_cast %9 : vector<64xf32> to vector<1x64xf32>
    %11 = math.log %10 : vector<1x64xf32>
    %12 = tpu.iota {dimensions = array<i32: 0>} : vector<4x64xi32>
    %13 = vector.broadcast %3 : vector<1x64xi32> to vector<4x64xi32>
    %14 = arith.cmpi eq, %12, %13 : vector<4x64xi32>
    %15 = arith.extui %14 : vector<4x64xi1> to vector<4x64xi32>
    %16 = arith.sitofp %15 : vector<4x64xi32> to vector<4x64xf32>
    %17 = arith.mulf %16, %7 : vector<4x64xf32>
    %cst_6 = arith.constant dense<0.000000e+00> : vector<64xf32>
    %18 = vector.multi_reduction <add>, %17, %cst_6 [0] : vector<4x64xf32> to vector<64xf32>
    %19 = vector.shape_cast %18 : vector<64xf32> to vector<1x64xf32>
    %20 = arith.subf %19, %11 : vector<1x64xf32>
    %21 = math.exp %20 : vector<1x64xf32>
    %cst_7 = arith.constant 1.000000e+00 : f32
    %22 = vector.broadcast %cst_7 : f32 to vector<1x64xf32>
    %23 = arith.subf %22, %21 : vector<1x64xf32>
    %cst_8 = arith.constant 0.000000e+00 : f32
    %24 = vector.broadcast %cst_8 : f32 to vector<1x64xf32>
    %25 = arith.maximumf %23, %24 : vector<1x64xf32>
    %26 = math.sqrt %25 : vector<1x64xf32>
    %cst_9 = arith.constant 0.000000e+00 : f32
    %27 = vector.broadcast %cst_9 : f32 to vector<1x64xf32>
    %28 = arith.subf %27, %26 : vector<1x64xf32>
    %29 = arith.mulf %28, %20 : vector<1x64xf32>
    %c64_i32 = arith.constant 64 : i32
    %30 = arith.muli %arg1, %c64_i32 : i32
    %31 = tpu.iota {dimensions = array<i32: 1>} : vector<1x64xi32>
    %32 = vector.broadcast %30 : i32 to vector<1x64xi32>
    %33 = arith.addi %32, %31 : vector<1x64xi32>
    %c64_i32_10 = arith.constant 64 : i32
    %34 = vector.broadcast %c64_i32_10 : i32 to vector<1x64xi32>
    %35 = arith.cmpi slt, %33, %34 : vector<1x64xi32>
    %cst_11 = arith.constant 0.000000e+00 : f32
    %36 = vector.broadcast %cst_11 : f32 to vector<1x64xf32>
    %37 = arith.select %35, %29, %36 : vector<1x64xi1>, vector<1x64xf32>
    %38 = vector.shape_cast %37 : vector<1x64xf32> to vector<1x1x64xf32>
    %cst_12 = arith.constant dense<0.000000e+00> : vector<1xf32>
    %39 = vector.multi_reduction <add>, %38, %cst_12 [1, 2] : vector<1x1x64xf32> to vector<1xf32>
    %40 = vector.shape_cast %39 : vector<1xf32> to vector<1x1x1xf32>
    %41 = vector.extract %40[0, 0, 0] : f32 from vector<1x1x1xf32>
    %42 = vector.broadcast %41 : f32 to vector<1x1x1x128xf32>
    %c0_13 = arith.constant 0 : index
    %c0_14 = arith.constant 0 : index
    %c0_15 = arith.constant 0 : index
    %c0_16 = arith.constant 0 : index
    %43 = vector.load %arg4[%c0_13, %c0_14, %c0_15, %c0_16] : memref<1x1x1x128xf32, #tpu.memory_space<vmem>>, vector<1x1x1x128xf32>
    tpu.vector_store %arg4[%c0_13, %c0_14, %c0_15, %c0_16], %42 {strides = array<i32>} : memref<1x1x1x128xf32, #tpu.memory_space<vmem>>, vector<1x1x1x128xf32>,
    return
  }
  func.func @transform_0(%arg0: i32, %arg1: i32) -> (i32, i32, i32) {
    %c0_i32 = arith.constant 0 : i32
    %c0_i32_0 = arith.constant 0 : i32
    return %arg0, %c0_i32, %arg1 : i32, i32, i32
  }
  func.func @transform_1(%arg0: i32, %arg1: i32) -> (i32, i32, i32) {
    %c0_i32 = arith.constant 0 : i32
    %c0_i32_0 = arith.constant 0 : i32
    return %arg0, %c0_i32, %arg1 : i32, i32, i32
  }
  func.func @transform_2(%arg0: i32, %arg1: i32) -> (i32, i32, i32, i32) {
    %c0_i32 = arith.constant 0 : i32
    %c0_i32_0 = arith.constant 0 : i32
    %c0_i32_1 = arith.constant 0 : i32
    return %arg0, %arg1, %c0_i32, %c0_i32_0 : i32, i32, i32, i32
  }
}

</mosaic_0001>

<llo_original>
// kernel: tpu_custom_call.1
$region0: #{tpu_custom_call.1}
  #allocation0 [shape = 'u32[]', space=smem, size = 0x4, offset = 0x4, fixed_abs, tag = 'smem constant byte address 0x4 - core index']
  #allocation1 [shape = 'u32[144,128]{1,0:T(1,128)}', space=vmem, size = 0x12000, scoped, tag = 'internal scratch']
  %s0 = inlined_call_operand.hbm [shape: f32[2,4,64], index: 0, kind: input, shape index: {}]
  %s1 = inlined_call_operand.vmem [shape: s32[2,1,64], index: 1, kind: input, shape index: {}]
  %s2 = inlined_call_operand.hbm [shape: f32[2,1,1,128], index: 2, kind: output, shape index: {}]
  %s3 = sld [smem:[#allocation0]]
  $region45: #{tpu_custom_call.1} parent=0
    _
  %s5 = ssub.s32 1, %s3
  %s6 = scalar_select 0, %s5, %s3
  $region1: #{tpu_custom_call.1} parent=0
    #allocation2 [shape = 'u8[4096]{0}', space=vmem, size = 0x1000, scoped, tag = 'input window, operand 0']
    #allocation3 [shape = 's32[2]{0}', space=sflag, size = 0x8, scoped, tag = 'scoped memory for tpu_custom_call.1']
    #allocation4 [shape = 's32[2]{0}', space=sflag, size = 0x8, scoped, tag = 'scoped memory for tpu_custom_call.1']
    #allocation5 [shape = 'u8[1024]{0}', space=vmem, size = 0x400, scoped, tag = 'output window, operand 0']
    %7 = vsyncpa [#allocation3], 0
    %s8 = scalar_lea.sflag [#allocation3], 1
    %9 = vsyncpa %s8, 0
    %10 = vsyncpa [#allocation4], 0
    %s11 = scalar_lea.sflag [#allocation4], 1
    %12 = vsyncpa %s11, 0
    loop: start=0, step=1, limit=4
    $region2: #{tpu_custom_call.1} parent=1 // loop_pre_header
      _
    $region3: #{tpu_custom_call.1} parent=1 // loop_header
      %s14 = sphi 0, %s18
      %p15 = scmp.ge.s32.totalorder %s14, 4
      %s21 = sphi 0, %s33
      %s22 = sphi 0, %s29
      %s23 = sphi 0, %s21
      %s24 = sphi 0, %s22
      %s25 = sphi 0, %s23
      %s26 = sphi 0, %s24
      %s38 = sphi 0, %s40
      %s41 = sphi 0, %s38
      %s42 = sphi 0, %s41
      %s58 = sphi 0, %s42
      %s66 = sphi 0, %s68
      %s69 = sphi 0, %s66
      %s70 = sphi 0, %s69
      %s86 = sphi 0, %s70
      %s94 = sphi 0, %s96
      %s97 = sphi 0, %s94
      %s98 = sphi 0, %s97
      %s114 = sphi 0, %s98
    $region4: #{tpu_custom_call.1} parent=1 // loop_header_branch
      %17 = sbr.rel (%p15) target = $region8
    $region5: #{tpu_custom_call.1} parent=1 // loop_body
      %s19 = ssub.s32 %s14, 1
      %s20 = ssub.s32 %s14, 2
      %s27 = sadd.s32 1, %s22
      %p28 = scmp.ge.s32.totalorder %s27, 1
      %s29 = scalar_select %p28, 0, %s27
      %s30 = sadd.s32 1, %s21
      %s31 = scalar_select %p28, %s30, %s21
      %p32 = scmp.ge.s32.totalorder %s31, 2
      %s33 = scalar_select %p32, 0, %s31
      %s34 = ssub.s32 %s21, %s33
      %s35 = ssub.s32 %s22, %s29
      %s36 = sor.u32 %s34, %s35
      %p37 = scmp.eq.s32.totalorder %s36, 0
      %s39 = sadd.s32 %s38, 1
      %s40 = scalar_select %p37, %s38, %s39
      %p43 = pneg %p37
      %p44 = scmp.eq.s32.totalorder %s14, 1
      %p45 = por %p43, %p44
      %p46 = scmp.ne.s32.totalorder %s38, %s41
      %p47 = scmp.eq.s32.totalorder %s14, 0
      %p48 = por %p46, %p47
      %p49 = scmp.ne.s32.totalorder %s38, %s41
      %p50 = scmp.eq.s32.totalorder %s19, 1
      %p51 = por %p49, %p50
      %p52 = scmp.ne.s32.totalorder %s41, %s42
      %p53 = scmp.eq.s32.totalorder %s19, 0
      %p54 = por %p52, %p53
      %p55 = scmp.ne.s32.totalorder %s41, %s42
      %p56 = scmp.eq.s32.totalorder %s20, 1
      %p57 = por %p55, %p56
      %p59 = scmp.ne.s32.totalorder %s42, %s58
      %p60 = scmp.eq.s32.totalorder %s20, 0
      %p61 = por %p59, %p60
      %s62 = ssub.s32 %s21, %s33
      %s63 = ssub.s32 %s22, %s29
      %s64 = sor.u32 %s62, %s63
      %p65 = scmp.eq.s32.totalorder %s64, 0
      %s67 = sadd.s32 %s66, 1
      %s68 = scalar_select %p65, %s66, %s67
      %p71 = pneg %p65
      %p72 = scmp.eq.s32.totalorder %s14, 1
      %p73 = por %p71, %p72
      %p74 = scmp.ne.s32.totalorder %s66, %s69
      %p75 = scmp.eq.s32.totalorder %s14, 0
      %p76 = por %p74, %p75
      %p77 = scmp.ne.s32.totalorder %s66, %s69
      %p78 = scmp.eq.s32.totalorder %s19, 1
      %p79 = por %p77, %p78
      %p80 = scmp.ne.s32.totalorder %s69, %s70
      %p81 = scmp.eq.s32.totalorder %s19, 0
      %p82 = por %p80, %p81
      %p83 = scmp.ne.s32.totalorder %s69, %s70
      %p84 = scmp.eq.s32.totalorder %s20, 1
      %p85 = por %p83, %p84
      %p87 = scmp.ne.s32.totalorder %s70, %s86
      %p88 = scmp.eq.s32.totalorder %s20, 0
      %p89 = por %p87, %p88
      %s90 = ssub.s32 %s21, %s33
      %s91 = ssub.s32 %s22, %s29
      %s92 = sor.u32 %s90, %s91
      %p93 = scmp.eq.s32.totalorder %s92, 0
      %s95 = sadd.s32 %s94, 1
      %s96 = scalar_select %p93, %s94, %s95
      %p99 = pneg %p93
      %p100 = scmp.eq.s32.totalorder %s14, 1
      %p101 = por %p99, %p100
      %p102 = scmp.ne.s32.totalorder %s94, %s97
      %p103 = scmp.eq.s32.totalorder %s14, 0
      %p104 = por %p102, %p103
      %p105 = scmp.ne.s32.totalorder %s94, %s97
      %p106 = scmp.eq.s32.totalorder %s19, 1
      %p107 = por %p105, %p106
      %p108 = scmp.ne.s32.totalorder %s97, %s98
      %p109 = scmp.eq.s32.totalorder %s19, 0
      %p110 = por %p108, %p109
      %p111 = scmp.ne.s32.totalorder %s97, %s98
      %p112 = scmp.eq.s32.totalorder %s20, 1
      %p113 = por %p111, %p112
      %p115 = scmp.ne.s32.totalorder %s98, %s114
      %p116 = scmp.eq.s32.totalorder %s20, 0
      %p117 = por %p115, %p116
      %p118 = scmp.le.s32.totalorder 1, %s14
      %p119 = scmp.lt.s32.totalorder %s14, 3
      %p120 = pnand %p118, %p119
      %p121 = pneg %p120
      // Predicated region
      $region9: #{tpu_custom_call.1} parent=5 // pred_check
        _
      $region10: #{tpu_custom_call.1} parent=5 // pred_check_branch
        %123 = sbr.rel (%p120) target = $region12
      $region11: #{tpu_custom_call.1} parent=5 // pred_region
        %s124 = ssub.s32 %s14, 1
      $region12: #{tpu_custom_call.1} parent=5 // pred_fallthru
        _
      %p125 = scmp.lt.s32.totalorder %s14, 2
      // Predicated region
      $region13: #{tpu_custom_call.1} parent=5 // pred_check
        %p126 = pneg %p125
      $region14: #{tpu_custom_call.1} parent=5 // pred_check_branch
        %128 = sbr.rel (%p126) target = $region16
      $region15: #{tpu_custom_call.1} parent=5 // pred_region
        // Predicated region
        $region17: #{tpu_custom_call.1} parent=15 // pred_check
          %p129 = pneg %p48
        $region18: #{tpu_custom_call.1} parent=15 // pred_check_branch
          %131 = sbr.rel (%p129) target = $region20
        $region19: #{tpu_custom_call.1} parent=15 // pred_region
          %s132 = sand.u32 %s38, 1
          %s133 = scalar_lea.sflag [#allocation3], %s132
          %s134 = sand.u32 %s38, 1
          %s135 = smul.addr %s134, 4
          %s136 = scalar_lea.vmem [#allocation2], %s135
          %s138 = ssub.s32 64, 64
          %139 = vsyncadd %s133, %s138
          %s140 = sadd.s32 %s22, %s21
          %s141 = smul.addr %s140, 64
          %s142 = scalar_lea.hbm %s0, %s141
          %s144 = sshll.u32 %s136, 4
          %s145 = int_to_ptr.vmem [resolvable:$true] %s144
          %147 = dma.hbm_to_vmem [thread:$0]  %s142, 64, %s145, %s133
        $region20: #{tpu_custom_call.1} parent=15 // pred_fallthru
          _
        // Predicated region
        $region21: #{tpu_custom_call.1} parent=15 // pred_check
          %p148 = pneg %p76
        $region22: #{tpu_custom_call.1} parent=15 // pred_check_branch
          %150 = sbr.rel (%p148) target = $region24
        $region23: #{tpu_custom_call.1} parent=15 // pred_region
          %p151 = scmp.lt.s32.totalorder %s21, 1
          %s152 = scalar_select %p151, %s21, 1
          %p153 = scmp.lt.s32.totalorder %s22, 0
          %s154 = scalar_select %p153, %s22, 0
          %s155 = sadd.s32 %s154, %s152
          %s156 = scalar_lea.vmem %s1, %s155
        $region24: #{tpu_custom_call.1} parent=15 // pred_fallthru
          _
      $region16: #{tpu_custom_call.1} parent=5 // pred_fallthru
        _
      %p157 = scmp.le.s32.totalorder 1, %s14
      %p158 = scmp.lt.s32.totalorder %s14, 3
      %p159 = pnand %p157, %p158
      %p160 = pneg %p159
      // Predicated region
      $region25: #{tpu_custom_call.1} parent=5 // pred_check
        _
      $region26: #{tpu_custom_call.1} parent=5 // pred_check_branch
        %162 = sbr.rel (%p159) target = $region28
      $region27: #{tpu_custom_call.1} parent=5 // pred_region
        %s163 = ssub.s32 %s14, 1
        %s164 = sand.u32 %s41, 1
        %s165 = scalar_lea.sflag [#allocation3], %s164
        %s166 = sand.u32 %s41, 1
        %s167 = smul.addr %s166, 4
        %s168 = scalar_lea.vmem [#allocation2], %s167
        // Predicated region
        $region29: #{tpu_custom_call.1} parent=27 // pred_check
          %p169 = pneg %p54
        $region30: #{tpu_custom_call.1} parent=27 // pred_check_branch
          %171 = sbr.rel (%p169) target = $region32
        $region31: #{tpu_custom_call.1} parent=27 // pred_region
          %172 = dma.done %s165, 64
        $region32: #{tpu_custom_call.1} parent=27 // pred_fallthru
          _
        %s173 = sand.u32 %s41, 1
        %s174 = scalar_lea.sflag [#allocation3], %s173
        %s175 = sand.u32 %s41, 1
        %s176 = smul.addr %s175, 4
        %s177 = scalar_lea.vmem [#allocation2], %s176
        %p178 = pneg %p54
        %p179 = pneg %p51
        %p180 = scmp.lt.s32.totalorder %s23, 1
        %s181 = scalar_select %p180, %s23, 1
        %p182 = scmp.lt.s32.totalorder %s24, 0
        %s183 = scalar_select %p182, %s24, 0
        %s184 = sadd.s32 %s183, %s181
        %s185 = scalar_lea.vmem %s1, %s184
        %p186 = pneg %p82
        %p187 = pneg %p79
        %p188 = pneg %p110
        %p189 = pneg %p107
        %s190 = sand.u32 %s97, 1
        %s191 = scalar_lea.sflag [#allocation4], %s190
        %s192 = sand.u32 %s97, 1
        %s193 = scalar_lea.vmem [#allocation5], %s192
        %p194 = scmp.lt.s32.totalorder %s23, 1
        %s195 = scalar_select %p194, %s23, 1
        %p196 = scmp.lt.s32.totalorder %s24, 0
        %s197 = scalar_select %p196, %s24, 0
        %s198 = sadd.s32 %s197, %s195
        %s199 = scalar_lea.vmem %s1, %s198
        %v200 = vld [vmem:[%s168] sm:$0xf]
        %v201 = vld [vmem:[%s199] sm:$0x1]
        %vm202 = vcmask 519168
        %v203 = vsel %vm202, %v200, -inf
        %v204 = vrot.slane %v203, 4
        %v205 = vmax.f32 %v203, %v204
        %v206 = vrot.slane %v205, 2
        %v207 = vmax.f32 %v205, %v206
        %v208 = vrot.slane %v207, 1
        %v209 = vmax.f32 %v207, %v208
        %v210 = vsub.f32 %v200, %v209
        %v211 = vmul.f32 %v210, 1.442695
        %v212 = vpow.pop %v211
        %v213 = vsel %vm202, %v212, 0.0
        %v214 = vrot.slane %v213, 4
        %v215 = vadd.f32 %v213, %v214
        %v216 = vrot.slane %v215, 2
        %v217 = vadd.f32 %v215, %v216
        %v218 = vrot.slane %v217, 1
        %v219 = vadd.f32 %v217, %v218
        %v220 = vlog2.pop %v219
        %v221 = vmul.f32 %v220, 0.6931472
        %v222 = vlaneseq
        %v223 = vshrl.u32 %v222, 7
        %v224 = vlaneseq
        %v225 = vshrl.u32 %v224, 7
        %v226 = vsub.s32 0, %v225
        %v227 = vrot.slane %v201, %v226
        %vm228 = vcmp.eq.s32.totalorder %v223, %v227
        %v229 = vsel %vm228, 1, 0
        %v230 = vcvt.s32.f32 %v229
        %v231 = vmul.f32 %v230, %v210
        %v232 = vsel %vm202, %v231, 0.0
        %v233 = vrot.slane %v232, 4
        %v234 = vadd.f32 %v232, %v233
        %v235 = vrot.slane %v234, 2
        %v236 = vadd.f32 %v234, %v235
        %v237 = vrot.slane %v236, 1
        %v238 = vadd.f32 %v236, %v237
        %v239 = vsub.f32 %v238, %v221
        %v240 = vmul.f32 %v239, 1.442695
        %v241 = vpow.pop %v240
        %v242 = vsub.f32 1.0, %v241
        %v243 = vmax.f32 %v242, 0.0
        %v244 = vrsqrt.pop %v243
        %v245 = vmul.f32 %v243, %v244
        %vm246 = vcmp.eq.f32.partialorder %v243, inf
        %v247 = vsel %vm246, %v243, %v245
        %vm248 = vcmp.eq.f32.partialorder %v243, 0.0
        %v249 = vand.u32 %v243, 2147483648
        %v250 = vsel %vm248, %v249, %v247
        %v251 = vsub.f32 0.0, %v250
        %v252 = vmul.f32 %v251, %v239
        %s253 = smul.u32 %s24, 64
        %v254 = vlaneseq
        %v255 = vand.u32 %v254, 127
        %v256 = vstv %s253
        %v257 = vadd.s32 %v256, %v255
        %vm258 = vcmp.lt.s32.totalorder %v257, 64
        %v259 = vsel %vm258, %v252, 0.0
        %vm260 = vcmask 516096
        %v261 = vsel %vm260, %v259, 0.0
        %262 = vadd.xlane.f32.xlu0 %v261
        %v263 = vpop.xlane.xlu0 %262
        %v264 = vrot.slane %v263, 4
        %v265 = vadd.f32 %v263, %v264
        %v266 = vrot.slane %v265, 2
        %v267 = vadd.f32 %v265, %v266
        %v268 = vrot.slane %v267, 1
        %v269 = vadd.f32 %v267, %v268
        %s270 = vtos %v269
        %v271 = vstv %s270
        %272 = vst [vmem:[%s193] sm:$0x1] %v271
        %s273 = sand.u32 %s97, 1
        %s274 = scalar_lea.sflag [#allocation4], %s273
        %s275 = sand.u32 %s97, 1
        %s276 = scalar_lea.vmem [#allocation5], %s275
        // Predicated region
        $region33: #{tpu_custom_call.1} parent=27 // pred_check
          %p277 = pneg %p107
        $region34: #{tpu_custom_call.1} parent=27 // pred_check_branch
          %279 = sbr.rel (%p277) target = $region36
        $region35: #{tpu_custom_call.1} parent=27 // pred_region
          %s281 = ssub.s32 16, 16
          %282 = vsyncadd %s274, %s281
          %s283 = sadd.s32 %s24, %s23
          %s284 = smul.addr %s283, 16
          %s285 = scalar_lea.hbm %s2, %s284
          %s287 = sshll.u32 %s276, 4
          %s288 = int_to_ptr.vmem [resolvable:$true] %s287
          %290 = dma.vmem_to_hbm [thread:$0]  %s288, 16, %s285, %s274
        $region36: #{tpu_custom_call.1} parent=27 // pred_fallthru
          _
      $region28: #{tpu_custom_call.1} parent=5 // pred_fallthru
        _
      %p291 = scmp.le.s32.totalorder 2, %s14
      // Predicated region
      $region37: #{tpu_custom_call.1} parent=5 // pred_check
        %p292 = pneg %p291
      $region38: #{tpu_custom_call.1} parent=5 // pred_check_branch
        %294 = sbr.rel (%p292) target = $region40
      $region39: #{tpu_custom_call.1} parent=5 // pred_region
        %s295 = ssub.s32 %s14, 2
        // Predicated region
        $region41: #{tpu_custom_call.1} parent=39 // pred_check
          %p296 = pneg %p113
        $region42: #{tpu_custom_call.1} parent=39 // pred_check_branch
          %298 = sbr.rel (%p296) target = $region44
        $region43: #{tpu_custom_call.1} parent=39 // pred_region
          %s299 = sand.u32 %s98, 1
          %s300 = scalar_lea.sflag [#allocation4], %s299
          %s301 = sand.u32 %s98, 1
          %s302 = scalar_lea.vmem [#allocation5], %s301
          %303 = dma.done %s300, 16
        $region44: #{tpu_custom_call.1} parent=39 // pred_fallthru
          _
      $region40: #{tpu_custom_call.1} parent=5 // pred_fallthru
        _
    $region6: #{tpu_custom_call.1} parent=1 // loop_footer
      %s18 = sadd.s32 1, %s14
    $region7: #{tpu_custom_call.1} parent=1 // loop_footer_branch
      %13 = sbr.rel target = $region3
    $region8: #{tpu_custom_call.1} parent=1 // loop_exit
      _
    %304 = vsyncpa [#allocation3], 1
    %s305 = scalar_lea.sflag [#allocation3], 1
    %306 = vsyncpa %s305, 1
    %307 = vsyncpa [#allocation4], 1
    %s308 = scalar_lea.sflag [#allocation4], 1
    %309 = vsyncpa %s308, 1

</llo_original>
